<compile_context>
chip_gen: v7x
topology: tpu7x:2x2x1
jax: 0.10.0
libtpu: 0.0.40
codegen_flags: <defaults>
</compile_context>

<pallas_src>
import jax
import jax.numpy as jnp
from jax.experimental import pallas as pl
from jax.experimental.pallas import tpu as pltpu

EPS = 1e-5
LANE = 128
SUB = 8


def _round_up(x, m):
    return ((x + m - 1) // m) * m


def _pad_axis(x, axis, target):
    if x.shape[axis] == target:
        return x
    cfg = [(0, 0)] * x.ndim
    cfg[axis] = (0, target - x.shape[axis])
    return jnp.pad(x, cfg)


# ---------- Pass 1: conv matmul (transposed layout) + per-tile BN partial sums ----------
def _conv_stats_kernel(wt_ref, pt_ref, y_ref, stats_ref):
    # MXU: (cout_p, kdim) @ (kdim, tm), bf16 operands, f32 accumulate.
    y = jnp.dot(wt_ref[...], pt_ref[...], preferred_element_type=jnp.float32)
    y_ref[...] = y
    # No conv bias + zero-padded M columns => padded columns contribute exactly 0 to
    # both sums, so no masking is needed.  Two sub-stores (no concatenate relayout).
    stats_ref[0, :, 0:1] = jnp.sum(y, axis=1, keepdims=True)       # per-channel sum
    stats_ref[0, :, 1:2] = jnp.sum(y * y, axis=1, keepdims=True)   # per-channel sum sq
    # TODO(synk): at production M (millions of rows) switch to Welford-style
    # (count, mean, M2) partials; one-pass E[x^2]-E[x]^2 can cancel in f32.


# ---------- Pass 2: folded BN affine + ReLU, in place over y (aliased) ----------
def _bn_relu_kernel(y_ref, ss_ref, o_ref):
    scale = ss_ref[:, 0:1]          # (cout_p, 1) broadcasts over the lane (M) axis
    shift = ss_ref[:, 1:2]
    o_ref[...] = jnp.maximum(y_ref[...] * scale + shift, 0.0)


def im2col_T_nchw(x_nchw, ksize, stride, padding):
    """x: (N, Cin, H, W) -> P^T of shape (K*K*Cin, N*Ho*Wo); row order (kh, kw, cin)."""
    n, cin, h, w = x_nchw.shape
    x_nhwc = jnp.transpose(x_nchw, (0, 2, 3, 1))
    xp = jnp.pad(x_nhwc, ((0, 0), (padding, padding), (padding, padding), (0, 0)))
    ho = (h + 2 * padding - ksize) // stride + 1
    wo = (w + 2 * padding - ksize) // stride + 1
    slabs = []
    for kh in range(ksize):
        for kw in range(ksize):
            slabs.append(xp[:, kh:kh + stride * ho:stride, kw:kw + stride * wo:stride, :])
    p = jnp.stack(slabs, axis=0)                  # (K*K, N, Ho, Wo, Cin)
    p = jnp.transpose(p, (0, 4, 1, 2, 3))         # (K*K, Cin, N, Ho, Wo)
    return p.reshape(ksize * ksize * cin, n * ho * wo), (n, ho, wo)


def _choose_tm(m, kdim, cout_p, tm_target=1024, vmem_budget=12 * 1024 * 1024):
    """Largest lane-multiple M tile such that
       (a) there are >= 2 grid tiles whenever M allows (v7x has 2 TensorCores), and
       (b) the double-buffered pass-1 footprint stays under ~12 MiB (safe for the
           v5e scoped-VMEM default; raise vmem_limit_bytes to go bigger)."""
    def footprint(tm):
        # 2x double buffer: bf16 patches block + f32 y block; + resident W^T / stats.
        return 2 * (kdim * tm * 2 + cout_p * tm * 4) + cout_p * kdim * 2 + 4096

    tm = min(tm_target, _round_up(max((m + 1) // 2, LANE), LANE))
    tm = max(LANE, (tm // LANE) * LANE)
    while tm > LANE and footprint(tm) > vmem_budget:
        tm -= LANE
    return tm


def conv_block_forward(x_nchw, weight, bias, gamma, beta, *, stride, padding, tm=None):
    """weight: (Cout, Cin, K, K) — PyTorch OIHW.  Returns NCHW float32.

    `bias` is accepted for API parity but intentionally unused: BatchNorm in training
    mode subtracts the batch mean, so the conv bias cancels exactly in the output.
    """
    del bias
    cout, cin, k, _ = weight.shape
    patches_t, (n, ho, wo) = im2col_T_nchw(x_nchw, k, stride, padding)
    kdim, m = patches_t.shape

    # Channels -> sublanes (pad to 8); M -> lanes (pad to a multiple of the tile);
    # contraction dim left unpadded (full-extent blocks are legal).
    cout_p = _round_up(cout, SUB)
    if tm is None:
        tm = _choose_tm(m, kdim, cout_p)
    mp = _round_up(m, tm)
    num_tiles = mp // tm

    # bf16 big operands (memory-bound kernel); f32 accumulation on the MXU.
    patches_p = _pad_axis(patches_t, 1, mp).astype(jnp.bfloat16)        # (kdim, mp)
    w_t = jnp.transpose(weight, (0, 2, 3, 1)).reshape(cout, kdim)       # (cout, kdim)
    w_p = _pad_axis(w_t, 0, cout_p).astype(jnp.bfloat16)                # (cout_p, kdim)

    y_flat, stats = pl.pallas_call(
        _conv_stats_kernel,
        out_shape=(jax.ShapeDtypeStruct((cout_p, mp), jnp.float32),
                   jax.ShapeDtypeStruct((num_tiles, cout_p, 2), jnp.float32)),
        grid=(num_tiles,),
        in_specs=[
            pl.BlockSpec((cout_p, kdim), lambda i: (0, 0)),
            pl.BlockSpec((kdim, tm), lambda i: (0, i)),
        ],
        out_specs=(pl.BlockSpec((cout_p, tm), lambda i: (0, i)),
                   pl.BlockSpec((1, cout_p, 2), lambda i: (i, 0, 0))),
        compiler_params=pltpu.CompilerParams(
            dimension_semantics=("parallel",)),
    )(w_p, patches_p)

    # Tiny per-channel glue in plain JAX: global BN stats + folded affine.
    s = jnp.sum(stats, axis=0)                               # (cout_p, 2)
    mean = s[:, 0] / m
    var = jnp.maximum(s[:, 1] / m - mean * mean, 0.0)        # biased var (BN training)
    inv = jax.lax.rsqrt(var + EPS)
    gamma_p = _pad_axis(gamma, 0, cout_p).astype(jnp.float32)
    beta_p = _pad_axis(beta, 0, cout_p).astype(jnp.float32)
    scale = gamma_p * inv
    shift = beta_p - mean * scale
    ss = jnp.stack([scale, shift], axis=1)                   # (cout_p, 2): one packed DMA

    out_flat = pl.pallas_call(
        _bn_relu_kernel,
        out_shape=jax.ShapeDtypeStruct((cout_p, mp), jnp.float32),
        grid=(num_tiles,),
        in_specs=[pl.BlockSpec((cout_p, tm), lambda i: (0, i)),
                  pl.BlockSpec((cout_p, 2), lambda i: (0, 0))],
        out_specs=pl.BlockSpec((cout_p, tm), lambda i: (0, i)),
        input_output_aliases={0: 0},          # BN+ReLU in place over y: no new HBM buf
        compiler_params=pltpu.CompilerParams(
            dimension_semantics=("parallel",)),
    )(y_flat, ss)

    # (cout, M) -> NCHW to match the PyTorch module.  TODO(synk): if the consumer can
    # take channel-major / NHWC, return out_flat[:cout, :m].reshape(...) directly.
    out = out_flat[:cout, :m].reshape(cout, n, ho, wo)
    return jnp.transpose(out, (1, 0, 2, 3))


def reference_forward(x_nchw, weight, bias, gamma, beta, *, stride, padding):
    # Same quantization choice as the kernel: bf16 conv operands, f32 accumulate,
    # all BN math in f32.  Bias is included here; it cancels through training-mode BN.
    y = jax.lax.conv_general_dilated(
        x_nchw.astype(jnp.bfloat16), weight.astype(jnp.bfloat16),
        window_strides=(stride, stride),
        padding=((padding, padding), (padding, padding)),
        dimension_numbers=("NCHW", "OIHW", "NCHW"),
        preferred_element_type=jnp.float32)
    y = y + bias[None, :, None, None]
    mean = jnp.mean(y, axis=(0, 2, 3), keepdims=True)
    var = jnp.var(y, axis=(0, 2, 3), keepdims=True)          # biased, like BN training
    y = gamma[None, :, None, None] * (y - mean) * jax.lax.rsqrt(var + EPS) \
        + beta[None, :, None, None]
    return jnp.maximum(y, 0.0)


if __name__ == "__main__":
    # Conv_block(input_channels=4, output_channels=8, kernel_size=3, stride=1, padding=1)
    N, CIN, H, W = 2, 4, 16, 16
    COUT, K, STRIDE, PAD = 8, 3, 1, 1

    key = jax.random.PRNGKey(0)
    kx, kw, kb, kg, kbeta = jax.random.split(key, 5)
    x = jax.random.normal(kx, (N, CIN, H, W), dtype=jnp.float32)
    weight = jax.random.normal(kw, (COUT, CIN, K, K), dtype=jnp.float32) * 0.1
    bias = jax.random.normal(kb, (COUT,), dtype=jnp.float32) * 0.1
    gamma = 1.0 + 0.1 * jax.random.normal(kg, (COUT,), dtype=jnp.float32)
    beta = 0.1 * jax.random.normal(kbeta, (COUT,), dtype=jnp.float32)

    out = conv_block_forward(x, weight, bias, gamma, beta, stride=STRIDE, padding=PAD)
    out = jax.block_until_ready(out)

    ref = reference_forward(x, weight, bias, gamma, beta, stride=STRIDE, padding=PAD)
    assert out.shape == (N, COUT, H, W), out.shape
    max_err = float(jnp.max(jnp.abs(out - ref)))
    assert jnp.allclose(out, ref, atol=5e-3, rtol=5e-3), max_err

    print("KERNEL_OK")
</pallas_src>

<mosaic_0001>
module attributes {stable_mosaic.version = 11 : i64} {
  func.func @_conv_stats_kernel(%arg0: i32, %arg1: memref<8x36xbf16, #tpu.memory_space<vmem>>, %arg2: memref<36x256xbf16, #tpu.memory_space<vmem>>, %arg3: memref<8x256xf32, #tpu.memory_space<vmem>>, %arg4: memref<1x8x2xf32, #tpu.memory_space<vmem>>) attributes {dimension_semantics = [#tpu.dimension_semantics<parallel>], iteration_bounds = array<i64: 2>, scalar_prefetch = 0 : i64, scratch_operands = 0 : i64, tpu.core_type = #tpu.core_type<tc>, window_params = [{pipeline_mode = #tpu.pipeline_mode<synchronous>, transform_indices = @transform_0, window_bounds = array<i64: 8, 36>}, {transform_indices = @transform_1, window_bounds = array<i64: 36, 256>}, {transform_indices = @transform_2, window_bounds = array<i64: 8, 256>}, {transform_indices = @transform_3, window_bounds = array<i64: 1, 8, 2>}]} {
    %c0 = arith.constant 0 : index
    %c0_0 = arith.constant 0 : index
    %0 = vector.load %arg1[%c0, %c0_0] : memref<8x36xbf16, #tpu.memory_space<vmem>>, vector<8x36xbf16>
    %c0_1 = arith.constant 0 : index
    %c0_2 = arith.constant 0 : index
    %1 = vector.load %arg2[%c0_1, %c0_2] : memref<36x256xbf16, #tpu.memory_space<vmem>>, vector<36x256xbf16>
    %cst = arith.constant dense<0.000000e+00> : vector<8x256xf32>
    %2 = tpu.matmul %0, %1, %cst {dimension_numbers = #tpu.dot_dimension_numbers<[1], [0], [0], [1], [0, 0, 1, 1], [], []>} : vector<8x36xbf16>, vector<36x256xbf16>, vector<8x256xf32> -> vector<8x256xf32>
    %c0_3 = arith.constant 0 : index
    %c0_4 = arith.constant 0 : index
    %3 = vector.load %arg3[%c0_3, %c0_4] : memref<8x256xf32, #tpu.memory_space<vmem>>, vector<8x256xf32>
    tpu.vector_store %arg3[%c0_3, %c0_4], %2 {strides = array<i32>} : memref<8x256xf32, #tpu.memory_space<vmem>>, vector<8x256xf32>,
    %cst_5 = arith.constant dense<0.000000e+00> : vector<8xf32>
    %4 = vector.multi_reduction <add>, %2, %cst_5 [1] : vector<8x256xf32> to vector<8xf32>
    %5 = vector.shape_cast %4 : vector<8xf32> to vector<8x1xf32>
    %c0_6 = arith.constant 0 : index
    %c0_7 = arith.constant 0 : index
    %c0_8 = arith.constant 0 : index
    %6 = vector.load %arg4[%c0_6, %c0_7, %c0_8] : memref<1x8x2xf32, #tpu.memory_space<vmem>>, vector<1x8x1xf32>
    %7 = vector.shape_cast %6 : vector<1x8x1xf32> to vector<8x1xf32>
    %8 = vector.shape_cast %5 : vector<8x1xf32> to vector<1x8x1xf32>
    tpu.vector_store %arg4[%c0_6, %c0_7, %c0_8], %8 {strides = array<i32>} : memref<1x8x2xf32, #tpu.memory_space<vmem>>, vector<1x8x1xf32>,
    %9 = arith.mulf %2, %2 : vector<8x256xf32>
    %cst_9 = arith.constant dense<0.000000e+00> : vector<8xf32>
    %10 = vector.multi_reduction <add>, %9, %cst_9 [1] : vector<8x256xf32> to vector<8xf32>
    %11 = vector.shape_cast %10 : vector<8xf32> to vector<8x1xf32>
    %c0_10 = arith.constant 0 : index
    %c0_11 = arith.constant 0 : index
    %c1 = arith.constant 1 : index
    %12 = vector.load %arg4[%c0_10, %c0_11, %c1] : memref<1x8x2xf32, #tpu.memory_space<vmem>>, vector<1x8x1xf32>
    %13 = vector.shape_cast %12 : vector<1x8x1xf32> to vector<8x1xf32>
    %14 = vector.shape_cast %11 : vector<8x1xf32> to vector<1x8x1xf32>
    tpu.vector_store %arg4[%c0_10, %c0_11, %c1], %14 {strides = array<i32>} : memref<1x8x2xf32, #tpu.memory_space<vmem>>, vector<1x8x1xf32>,
    return
  }
  func.func @transform_0(%arg0: i32) -> (i32, i32) {
    %c0_i32 = arith.constant 0 : i32
    %c0_i32_0 = arith.constant 0 : i32
    %c0_i32_1 = arith.constant 0 : i32
    return %c0_i32, %c0_i32_0 : i32, i32
  }
  func.func @transform_1(%arg0: i32) -> (i32, i32) {
    %c0_i32 = arith.constant 0 : i32
    %c0_i32_0 = arith.constant 0 : i32
    return %c0_i32, %arg0 : i32, i32
  }
  func.func @transform_2(%arg0: i32) -> (i32, i32) {
    %c0_i32 = arith.constant 0 : i32
    %c0_i32_0 = arith.constant 0 : i32
    return %c0_i32, %arg0 : i32, i32
  }
  func.func @transform_3(%arg0: i32) -> (i32, i32, i32) {
    %c0_i32 = arith.constant 0 : i32
    %c0_i32_0 = arith.constant 0 : i32
    %c0_i32_1 = arith.constant 0 : i32
    return %arg0, %c0_i32, %c0_i32_0 : i32, i32, i32
  }
}

</mosaic_0001>

<llo_original>
// kernel: tpu_custom_call.1
$region0: #{tpu_custom_call.1}
  #allocation0 [shape = 'u32[]', space=smem, size = 0x4, offset = 0x4, fixed_abs, tag = 'smem constant byte address 0x4 - core index']
  #allocation1 [shape = 'u32[144,128]{1,0:T(1,128)}', space=vmem, size = 0x12000, scoped, tag = 'internal scratch']
  %s0 = inlined_call_operand.hbm [shape: bf16[8,36], index: 0, kind: input, shape index: {}]
  %s1 = inlined_call_operand.hbm [shape: bf16[36,512], index: 1, kind: input, shape index: {}]
  %s2 = inlined_call_operand.hbm [shape: f32[8,512], index: 2, kind: output, shape index: {0}]
  %s3 = inlined_call_operand.vmem [shape: f32[2,8,2], index: 3, kind: output, shape index: {1}]
  %4 = xla_tuple %s2, %s3
  %s5 = sld [smem:[#allocation0]]
  $region57: #{tpu_custom_call.1} parent=0
    _
  %s7 = ssub.s32 1, %s5
  %s8 = scalar_select 0, %s7, %s5
  $region1: #{tpu_custom_call.1} parent=0
    #allocation2 [shape = 'u8[2048]{0}', space=vmem, size = 0x800, scoped, tag = 'input window, operand 0, single buffered']
    #allocation3 [shape = 's32[2]{0}', space=sflag, size = 0x8, scoped, tag = 'scoped memory for tpu_custom_call.1']
    #allocation4 [shape = 's32[2]{0}', space=sflag, size = 0x8, scoped, tag = 'scoped memory for tpu_custom_call.1']
    #allocation5 [shape = 'u8[40960]{0}', space=vmem, size = 0xa000, scoped, tag = 'input window, operand 1']
    #allocation6 [shape = 's32[2]{0}', space=sflag, size = 0x8, scoped, tag = 'scoped memory for tpu_custom_call.1']
    #allocation7 [shape = 'u8[16384]{0}', space=vmem, size = 0x4000, scoped, tag = 'output window, operand 0']
    %9 = vsyncpa [#allocation3], 0
    %10 = vsyncpa [#allocation6], 0
    %s11 = scalar_lea.sflag [#allocation6], 1
    %12 = vsyncpa %s11, 0
    %13 = vsyncpa [#allocation4], 0
    %s14 = scalar_lea.sflag [#allocation4], 1
    %15 = vsyncpa %s14, 0
    loop: start=0, step=1, limit=4
    $region2: #{tpu_custom_call.1} parent=1 // loop_pre_header
      _
    $region3: #{tpu_custom_call.1} parent=1 // loop_header
      %s17 = sphi 0, %s21
      %p18 = scmp.ge.s32.totalorder %s17, 4
      %s25 = sphi 0, %s25
      %s27 = sphi 0, %s25
      %s28 = sphi 0, %s27
      %s42 = sphi 0, %s28
      %s48 = sphi 0, %s50
      %s51 = sphi 0, %s48
      %s52 = sphi 0, %s51
      %s68 = sphi 0, %s52
      %s74 = sphi 0, %s76
      %s77 = sphi 0, %s74
      %s78 = sphi 0, %s77
      %s94 = sphi 0, %s78
      %s100 = sphi 0, %s102
      %s103 = sphi 0, %s100
      %s104 = sphi 0, %s103
      %s120 = sphi 0, %s104
    $region4: #{tpu_custom_call.1} parent=1 // loop_header_branch
      %20 = sbr.rel (%p18) target = $region8
    $region5: #{tpu_custom_call.1} parent=1 // loop_body
      %s22 = ssub.s32 %s17, 1
      %s23 = ssub.s32 %s17, 2
      %s24 = sadd.s32 %s17, 1
      %s26 = sadd.s32 %s25, 1
      %p29 = scmp.eq.s32.totalorder %s17, 1
      %p30 = scmp.ne.s32.totalorder %s25, %s27
      %p31 = scmp.eq.s32.totalorder %s17, 0
      %p32 = por %p30, %p31
      %p33 = scmp.ne.s32.totalorder %s25, %s27
      %p34 = scmp.eq.s32.totalorder %s22, 1
      %p35 = por %p33, %p34
      %p36 = scmp.ne.s32.totalorder %s27, %s28
      %p37 = scmp.eq.s32.totalorder %s22, 0
      %p38 = por %p36, %p37
      %p39 = scmp.ne.s32.totalorder %s27, %s28
      %p40 = scmp.eq.s32.totalorder %s23, 1
      %p41 = por %p39, %p40
      %p43 = scmp.ne.s32.totalorder %s28, %s42
      %p44 = scmp.eq.s32.totalorder %s23, 0
      %p45 = por %p43, %p44
      %s46 = ssub.s32 %s17, %s24
      %p47 = scmp.eq.s32.totalorder %s46, 0
      %s49 = sadd.s32 %s48, 1
      %s50 = scalar_select %p47, %s48, %s49
      %p53 = pneg %p47
      %p54 = scmp.eq.s32.totalorder %s17, 1
      %p55 = por %p53, %p54
      %p56 = scmp.ne.s32.totalorder %s48, %s51
      %p57 = scmp.eq.s32.totalorder %s17, 0
      %p58 = por %p56, %p57
      %p59 = scmp.ne.s32.totalorder %s48, %s51
      %p60 = scmp.eq.s32.totalorder %s22, 1
      %p61 = por %p59, %p60
      %p62 = scmp.ne.s32.totalorder %s51, %s52
      %p63 = scmp.eq.s32.totalorder %s22, 0
      %p64 = por %p62, %p63
      %p65 = scmp.ne.s32.totalorder %s51, %s52
      %p66 = scmp.eq.s32.totalorder %s23, 1
      %p67 = por %p65, %p66
      %p69 = scmp.ne.s32.totalorder %s52, %s68
      %p70 = scmp.eq.s32.totalorder %s23, 0
      %p71 = por %p69, %p70
      %s72 = ssub.s32 %s17, %s24
      %p73 = scmp.eq.s32.totalorder %s72, 0
      %s75 = sadd.s32 %s74, 1
      %s76 = scalar_select %p73, %s74, %s75
      %p79 = pneg %p73
      %p80 = scmp.eq.s32.totalorder %s17, 1
      %p81 = por %p79, %p80
      %p82 = scmp.ne.s32.totalorder %s74, %s77
      %p83 = scmp.eq.s32.totalorder %s17, 0
      %p84 = por %p82, %p83
      %p85 = scmp.ne.s32.totalorder %s74, %s77
      %p86 = scmp.eq.s32.totalorder %s22, 1
      %p87 = por %p85, %p86
      %p88 = scmp.ne.s32.totalorder %s77, %s78
      %p89 = scmp.eq.s32.totalorder %s22, 0
      %p90 = por %p88, %p89
      %p91 = scmp.ne.s32.totalorder %s77, %s78
      %p92 = scmp.eq.s32.totalorder %s23, 1
      %p93 = por %p91, %p92
      %p95 = scmp.ne.s32.totalorder %s78, %s94
      %p96 = scmp.eq.s32.totalorder %s23, 0
      %p97 = por %p95, %p96
      %s98 = ssub.s32 %s17, %s24
      %p99 = scmp.eq.s32.totalorder %s98, 0
      %s101 = sadd.s32 %s100, 1
      %s102 = scalar_select %p99, %s100, %s101
      %p105 = pneg %p99
      %p106 = scmp.eq.s32.totalorder %s17, 1
      %p107 = por %p105, %p106
      %p108 = scmp.ne.s32.totalorder %s100, %s103
      %p109 = scmp.eq.s32.totalorder %s17, 0
      %p110 = por %p108, %p109
      %p111 = scmp.ne.s32.totalorder %s100, %s103
      %p112 = scmp.eq.s32.totalorder %s22, 1
      %p113 = por %p111, %p112
      %p114 = scmp.ne.s32.totalorder %s103, %s104
      %p115 = scmp.eq.s32.totalorder %s22, 0
      %p116 = por %p114, %p115
      %p117 = scmp.ne.s32.totalorder %s103, %s104
      %p118 = scmp.eq.s32.totalorder %s23, 1
      %p119 = por %p117, %p118
      %p121 = scmp.ne.s32.totalorder %s104, %s120
      %p122 = scmp.eq.s32.totalorder %s23, 0
      %p123 = por %p121, %p122
      %p124 = scmp.le.s32.totalorder 1, %s17
      %p125 = scmp.lt.s32.totalorder %s17, 3
      %p126 = pnand %p124, %p125
      %p127 = pneg %p126
      // Predicated region
      $region9: #{tpu_custom_call.1} parent=5 // pred_check
        _
      $region10: #{tpu_custom_call.1} parent=5 // pred_check_branch
        %129 = sbr.rel (%p126) target = $region12
      $region11: #{tpu_custom_call.1} parent=5 // pred_region
        %s130 = ssub.s32 %s17, 1
        // Predicated region
        $region13: #{tpu_custom_call.1} parent=11 // pred_check
          %p131 = pneg %p38
        $region14: #{tpu_custom_call.1} parent=11 // pred_check_branch
          %133 = sbr.rel (%p131) target = $region16
        $region15: #{tpu_custom_call.1} parent=11 // pred_region
          %s135 = ssub.s32 64, 64
          %136 = vsyncadd [#allocation3], %s135
          %s138 = sshll.u32 [#allocation2], 4
          %s139 = int_to_ptr.vmem [resolvable:$true] %s138
          %141 = dma.hbm_to_vmem [thread:$0]  %s0, 64, %s139, [#allocation3]
        $region16: #{tpu_custom_call.1} parent=11 // pred_fallthru
          _
      $region12: #{tpu_custom_call.1} parent=5 // pred_fallthru
        _
      %p142 = scmp.lt.s32.totalorder %s17, 2
      // Predicated region
      $region17: #{tpu_custom_call.1} parent=5 // pred_check
        %p143 = pneg %p142
      $region18: #{tpu_custom_call.1} parent=5 // pred_check_branch
        %145 = sbr.rel (%p143) target = $region20
      $region19: #{tpu_custom_call.1} parent=5 // pred_region
        // Predicated region
        $region21: #{tpu_custom_call.1} parent=19 // pred_check
          %p146 = pneg %p58
        $region22: #{tpu_custom_call.1} parent=19 // pred_check_branch
          %148 = sbr.rel (%p146) target = $region24
        $region23: #{tpu_custom_call.1} parent=19 // pred_region
          %s149 = sand.u32 %s48, 1
          %s150 = scalar_lea.sflag [#allocation6], %s149
          %s151 = sand.u32 %s48, 1
          %s152 = smul.addr %s151, 40
          %s153 = scalar_lea.vmem [#allocation5], %s152
          %s154 = smul.u32 2, %s17
          %s156 = ssub.s32 640, 640
          %157 = vsyncadd %s150, %s156
          %s158 = smul.addr %s154, 64
          %s159 = scalar_lea.hbm %s1, %s158
          %s160 = sshll.u32 %s153, 4
          %s161 = int_to_ptr.vmem [resolvable:$true] %s160
          %166 = dma.hbm_to_vmem [thread:$0]  %s159, 640, %s161, %s150, 256, 128, 8
        $region24: #{tpu_custom_call.1} parent=19 // pred_fallthru
          _
      $region20: #{tpu_custom_call.1} parent=5 // pred_fallthru
        _
      %p167 = scmp.le.s32.totalorder 1, %s17
      %p168 = scmp.lt.s32.totalorder %s17, 3
      %p169 = pnand %p167, %p168
      %p170 = pneg %p169
      // Predicated region
      $region25: #{tpu_custom_call.1} parent=5 // pred_check
        _
      $region26: #{tpu_custom_call.1} parent=5 // pred_check_branch
        %172 = sbr.rel (%p169) target = $region28
      $region27: #{tpu_custom_call.1} parent=5 // pred_region
        %s173 = ssub.s32 %s17, 1
        // Predicated region
        $region29: #{tpu_custom_call.1} parent=27 // pred_check
          %p174 = pneg %p38
        $region30: #{tpu_custom_call.1} parent=27 // pred_check_branch
          %176 = sbr.rel (%p174) target = $region32
        $region31: #{tpu_custom_call.1} parent=27 // pred_region
          %177 = dma.done [#allocation3], 64
        $region32: #{tpu_custom_call.1} parent=27 // pred_fallthru
          _
        %s178 = sand.u32 %s51, 1
        %s179 = scalar_lea.sflag [#allocation6], %s178
        %s180 = sand.u32 %s51, 1
        %s181 = smul.addr %s180, 40
        %s182 = scalar_lea.vmem [#allocation5], %s181
        // Predicated region
        $region33: #{tpu_custom_call.1} parent=27 // pred_check
          %p183 = pneg %p64
        $region34: #{tpu_custom_call.1} parent=27 // pred_check_branch
          %185 = sbr.rel (%p183) target = $region36
        $region35: #{tpu_custom_call.1} parent=27 // pred_region
          %186 = dma.done %s179, 640
        $region36: #{tpu_custom_call.1} parent=27 // pred_fallthru
          _
        %p187 = pneg %p38
        %p188 = pneg %p35
        %s189 = sand.u32 %s51, 1
        %s190 = scalar_lea.sflag [#allocation6], %s189
        %s191 = sand.u32 %s51, 1
        %s192 = smul.addr %s191, 40
        %s193 = scalar_lea.vmem [#allocation5], %s192
        %p194 = pneg %p64
        %p195 = pneg %p61
        %p196 = pneg %p90
        %p197 = pneg %p87
        %s198 = sand.u32 %s77, 1
        %s199 = scalar_lea.sflag [#allocation4], %s198
        %s200 = sand.u32 %s77, 1
        %s201 = smul.addr %s200, 16
        %s202 = scalar_lea.vmem [#allocation7], %s201
        %p203 = pneg %p116
        %p204 = pneg %p113
        %p205 = scmp.lt.s32.totalorder %s22, 1
        %s206 = scalar_select %p205, %s22, 1
        %s207 = smul.addr %s206, 8
        %s208 = scalar_lea.vmem %s3, %s207
        %s209 = smul.u32 2, %s22
        %s210 = smul.u32 2, %s22
        %p211 = scmp.lt.s32.totalorder %s22, 1
        %s212 = scalar_select %p211, %s22, 1
        %s213 = smul.addr %s212, 8
        %s214 = scalar_lea.vmem %s3, %s213
        %v216 = vld [vmem:[#allocation2] sm:$0xf]
        %v217 = vld [vmem:[%s182] sm:$0xff]
        %v218 = vld [vmem:[%s182 + $0x8] sm:$0xff]
        %v219 = vld [vmem:[%s182 + $0x10] sm:$0xff]
        %v220 = vld [vmem:[%s182 + $0x18] sm:$0xff]
        %v221 = vld [vmem:[%s182 + $0x20] sm:$0x33]
        %v227 = vunpack.c.l.b16 %v217
        %v228 = vunpack.c.h.b16 %v217
        %v229 = vunpack.c.l.b16 %v218
        %v230 = vunpack.c.h.b16 %v218
        %v231 = vunpack.c.l.b16 %v219
        %v232 = vunpack.c.h.b16 %v219
        %v233 = vunpack.c.l.b16 %v220
        %v234 = vunpack.c.h.b16 %v220
        %v235 = vunpack.c.l.b16 %v221
        %v236 = vunpack.c.h.b16 %v221
        %v237 = vpack.c.b16 %v229, %v227
        %v238 = vpack.c.b16 %v230, %v228
        %v239 = vpack.c.b16 %v233, %v231
        %v240 = vpack.c.b16 %v234, %v232
        %v241 = vpack.c.b16 %v235, %v235
        %v242 = vpack.c.b16 %v236, %v236
        %vm247 = vcmask 293888
        %v249 = vsel %vm247, %v216, 0
        %vm251 = vcmask 1041408
        %v253 = vsel %vm251, %v241, 0
        %v256 = vsel %vm251, %v242, 0
        %258 = vmatprep.subr.bf16.mxu0 %v238
        %259 = vmatpush1.bf16.msra.mxu0 %v237
        %260 = vmatprep.subr.bf16.mxu0 %v240
        %261 = vmatpush1.bf16.msra.mxu0 %v239
        %262 = vmatprep.subr.bf16.mxu0 %v256
        %263 = vmatpush1.bf16.msra.mxu0 %v253
        %264 = vmatprep.subr.bf16.mxu0 0
        %265 = vmatpush1.bf16.msra.mxu0 0
        %266 = vmatprep.subr.bf16.mxu0 0
        %267 = vmatpush1.bf16.msra.mxu0 0
        %268 = vmatprep.subr.bf16.mxu0 0
        %269 = vmatpush1.bf16.msra.mxu0 0
        %270 = vmatprep.subr.bf16.mxu0 0
        %271 = vmatpush1.bf16.msra.mxu0 0
        %272 = vmatprep.subr.bf16.mxu0 0
        %273 = vmatpush1.bf16.msra.mxu0 0
        %274 = vmatprep.subr.bf16.mxu0 0
        %275 = vmatpush1.bf16.msra.mxu0 0
        %276 = vmatprep.subr.bf16.mxu0 0
        %277 = vmatpush1.bf16.msra.mxu0 0
        %278 = vmatprep.subr.bf16.mxu0 0
        %279 = vmatpush1.bf16.msra.mxu0 0
        %280 = vmatprep.subr.bf16.mxu0 0
        %281 = vmatpush1.bf16.msra.mxu0 0
        %282 = vmatprep.subr.bf16.mxu0 0
        %283 = vmatpush1.bf16.msra.mxu0 0
        %284 = vmatprep.subr.bf16.mxu0 0
        %285 = vmatpush1.bf16.msra.mxu0 0
        %286 = vmatprep.subr.bf16.mxu0 0
        %287 = vmatpush1.bf16.msra.mxu0 0
        %288 = vmatprep.subr.bf16.mxu0 0
        %289 = vmatpush1.bf16.msra.mxu0 0
        %290 = vmatprep.mubr.bf16.mxu0 0
        %291 = vmatmul.mubr.bf16.gmra.mrb[0].mxu0 %v249
        %v292 = vpop.f32.mrb[0].mxu0
        %v293 = vadd.f32 0.0, %v292
        %v294 = vpop.f32.mrb[0].mxu0
        %v295 = vadd.f32 0.0, %v294
        %v296 = vpop.f32.mrb[0].mxu0
        %v297 = vpop.f32.mrb[0].mxu0
        %298 = vdwg.mxu0
        %299 = vst [vmem:[%s202] sm:$0xff] %v293
        %300 = vst [vmem:[%s202 + $0x8] sm:$0xff] %v295
        %v301 = vadd.f32 %v293, %v295
        %302 = vadd.xlane.f32.xlu0 %v301
        %v303 = vpop.xlane.xlu0 %302
        %vm304 = vcmask 7168
        %305 = vst.msk [vmem:[%s214] sm:$0xff] %vm304, %v303
        %v306 = vmul.f32 %v293, %v293
        %v307 = vmul.f32 %v295, %v295
        %v308 = vadd.f32 %v306, %v307
        %309 = vadd.xlane.f32.xlu0 %v308
        %v310 = vpop.xlane.xlu0 %309
        %vm311 = vcmask 15368
        %312 = vst.msk [vmem:[%s214] sm:$0xff] %vm311, %v310
        %s313 = sand.u32 %s77, 1
        %s314 = scalar_lea.sflag [#allocation4], %s313
        %s315 = sand.u32 %s77, 1
        %s316 = smul.addr %s315, 16
        %s317 = scalar_lea.vmem [#allocation7], %s316
        %p318 = scmp.lt.s32.totalorder %s22, 1
        %s319 = scalar_select %p318, %s22, 1
        %s320 = smul.addr %s319, 8
        %s321 = scalar_lea.vmem %s3, %s320
        // Predicated region
        $region37: #{tpu_custom_call.1} parent=27 // pred_check
          %p322 = pneg %p87
        $region38: #{tpu_custom_call.1} parent=27 // pred_check_branch
          %324 = sbr.rel (%p322) target = $region40
        $region39: #{tpu_custom_call.1} parent=27 // pred_region
          %s325 = smul.u32 2, %s22
          %s327 = ssub.s32 256, 256
          %328 = vsyncadd %s314, %s327
          %s329 = smul.addr %s325, 128
          %s330 = scalar_lea.hbm %s2, %s329
          %s332 = sshll.u32 %s317, 4
          %s333 = int_to_ptr.vmem [resolvable:$true] %s332
          %335 = dma.vmem_to_hbm [thread:$0]  %s333, 256, %s330, %s314
        $region40: #{tpu_custom_call.1} parent=27 // pred_fallthru
          _
        // Predicated region
        $region41: #{tpu_custom_call.1} parent=27 // pred_check
          %p336 = pneg %p113
        $region42: #{tpu_custom_call.1} parent=27 // pred_check_branch
          %338 = sbr.rel (%p336) target = $region44
        $region43: #{tpu_custom_call.1} parent=27 // pred_region
          _
        $region44: #{tpu_custom_call.1} parent=27 // pred_fallthru
          _
      $region28: #{tpu_custom_call.1} parent=5 // pred_fallthru
        _
      %p339 = scmp.le.s32.totalorder 2, %s17
      // Predicated region
      $region45: #{tpu_custom_call.1} parent=5 // pred_check
        %p340 = pneg %p339
      $region46: #{tpu_custom_call.1} parent=5 // pred_check_branch
        %342 = sbr.rel (%p340) target = $region48
      $region47: #{tpu_custom_call.1} parent=5 // pred_region
        %s343 = ssub.s32 %s17, 2
        // Predicated region
        $region49: #{tpu_custom_call.1} parent=47 // pred_check
          %p344 = pneg %p93
        $region50: #{tpu_custom_call.1} parent=47 // pred_check_branch
          %346 = sbr.rel (%p344) target = $region52
        $region51: #{tpu_custom_call.1} parent=47 // pred_region
          %s347 = sand.u32 %s78, 1
          %s348 = scalar_lea.sflag [#allocation4], %s347
          %s349 = sand.u32 %s78, 1
          %s350 = smul.addr %s349, 16
          %s351 = scalar_lea.vmem [#allocation7], %s350
          %352 = dma.done %s348, 256
        $region52: #{tpu_custom_call.1} parent=47 // pred_fallthru
          _
        // Predicated region
        $region53: #{tpu_custom_call.1} parent=47 // pred_check
          %p353 = pneg %p119
        $region54: #{tpu_custom_call.1} parent=47 // pred_check_branch
          %355 = sbr.rel (%p353) target = $region56
        $region55: #{tpu_custom_call.1} parent=47 // pred_region
          %p356 = scmp.lt.s32.totalorder %s23, 1
          %s357 = scalar_select %p356, %s23, 1
          %s358 = smul.addr %s357, 8
          %s359 = scalar_lea.vmem %s3, %s358
        $region56: #{tpu_custom_call.1} parent=47 // pred_fallthru
          _
      $region48: #{tpu_custom_call.1} parent=5 // pred_fallthru
        _
    $region6: #{tpu_custom_call.1} parent=1 // loop_footer
      %s21 = sadd.s32 1, %s17
    $region7: #{tpu_custom_call.1} parent=1 // loop_footer_branch
      %16 = sbr.rel target = $region3
    $region8: #{tpu_custom_call.1} parent=1 // loop_exit
      _
    %360 = vsyncpa [#allocation3], 1
    %s361 = scalar_lea.sflag [#allocation3], 1
    %362 = vsyncpa %s361, 1
    %363 = vsyncpa [#allocation6], 1
    %s364 = scalar_lea.sflag [#allocation6], 1
    %365 = vsyncpa %s364, 1
    %366 = vsyncpa [#allocation4], 1
    %s367 = scalar_lea.sflag [#allocation4], 1
    %368 = vsyncpa %s367, 1

</llo_original>
